<compile_context>
chip_gen: v7x
topology: tpu7x:2x2x1
jax: 0.10.0
libtpu: 0.0.40
codegen_flags: <defaults>
</compile_context>

<pallas_src>
import math

import jax
import jax.numpy as jnp
from jax.experimental import pallas as pl
from jax.experimental.pallas import tpu as pltpu

IN_FEATURES = 3
OUT_FEATURES = 9
_SUBLANES = 8  # replication factor for sublane-dense parameter rows


def _linear_kernel(x_ref, p_ref, o_ref):
    """x_ref: (B, IN); p_ref: ((IN+1)*8, OUT) with each logical parameter row
    replicated across 8 sublanes (rows 0..IN-1 are W.T rows, row IN is bias);
    o_ref: (B, OUT)."""
    B = x_ref.shape[0]
    x = x_ref[...].astype(jnp.float32)

    # For B <= 8 read the pre-replicated rows directly (no XLU sublane
    # broadcast); otherwise fall back to (1, OUT) rows + implicit broadcast.
    rep = B if B <= _SUBLANES else 1

    def row(k):  # static slice -> free view, then a single load
        return p_ref[k * _SUBLANES: k * _SUBLANES + rep, :].astype(jnp.float32)

    # Bias initializes the accumulator (no trailing add), K=3 contraction as
    # explicit broadcasted FMAs on the VPU.
    acc = x[:, 0:1] * row(0) + row(IN_FEATURES)
    for k in range(1, IN_FEATURES):
        acc = acc + x[:, k:k + 1] * row(k)

    o_ref[...] = acc.astype(o_ref.dtype)


def linear_pallas(x, packed_params):
    """x: (B, IN); packed_params: ((IN+1)*8, OUT) from init_params()."""
    B, _ = x.shape
    vmem_spec = pl.BlockSpec(memory_space=pltpu.MemorySpace.VMEM)
    return pl.pallas_call(
        _linear_kernel,
        out_shape=jax.ShapeDtypeStruct((B, OUT_FEATURES), x.dtype),
        in_specs=[vmem_spec, vmem_spec],
        out_specs=vmem_spec,
    )(x, packed_params)


def init_params(key, in_features=IN_FEATURES, out_features=OUT_FEATURES,
                dtype=jnp.float32):
    """Deterministic init mimicking torch.nn.Linear defaults:
    U(-1/sqrt(in), 1/sqrt(in)) for weight and bias.

    Returns:
      packed_rep: ((in+1)*8, out) — rows [k*8 : k*8+8) all hold row k of W.T
                  for k < in, and the bias for k == in.  Laid out once at init
                  so the per-call path has no transpose/reshape/concat.
      weight:     (out, in)  PyTorch-layout weight (for reference checks).
      bias:       (out,)     bias (for reference checks).
    """
    kw, kb = jax.random.split(key)
    bound = 1.0 / math.sqrt(in_features)
    weight = jax.random.uniform(
        kw, (out_features, in_features), dtype, minval=-bound, maxval=bound)
    bias = jax.random.uniform(
        kb, (out_features,), dtype, minval=-bound, maxval=bound)

    packed = jnp.concatenate([weight.T, bias[None, :]], axis=0)  # (in+1, out)
    packed_rep = jnp.repeat(packed, _SUBLANES, axis=0)           # ((in+1)*8, out)
    return packed_rep, weight, bias


if __name__ == "__main__":
    key = jax.random.PRNGKey(0)
    k_x, k_p = jax.random.split(key)

    B = 8
    x = jax.random.normal(k_x, (B, IN_FEATURES), dtype=jnp.float32)
    packed_params, weight, bias = init_params(k_p)

    y = linear_pallas(x, packed_params)
    jax.block_until_ready(y)

    # Reference check against plain JAX (same math as PyTorch Linear forward).
    y_ref = x @ weight.T + bias
    assert y.shape == (B, OUT_FEATURES)
    assert jnp.allclose(y, y_ref, atol=1e-5, rtol=1e-5), "mismatch vs reference"

    print("KERNEL_OK")
</pallas_src>

<mosaic_0001>
module attributes {stable_mosaic.version = 11 : i64} {
  func.func @_linear_kernel(%arg0: memref<8x3xf32, #tpu.memory_space<vmem>>, %arg1: memref<32x9xf32, #tpu.memory_space<vmem>>, %arg2: memref<8x9xf32, #tpu.memory_space<vmem>>) attributes {dimension_semantics = [], scalar_prefetch = 0 : i64, scratch_operands = 0 : i64, tpu.core_type = #tpu.core_type<tc>} {
    %c0 = arith.constant 0 : index
    %c0_0 = arith.constant 0 : index
    %0 = vector.load %arg0[%c0, %c0_0] : memref<8x3xf32, #tpu.memory_space<vmem>>, vector<8x3xf32>
    %1 = vector.extract_strided_slice %0 {offsets = [0, 0], sizes = [8, 1], strides = [1, 1]} : vector<8x3xf32> to vector<8x1xf32>
    %c0_1 = arith.constant 0 : index
    %c0_2 = arith.constant 0 : index
    %2 = vector.load %arg1[%c0_1, %c0_2] : memref<32x9xf32, #tpu.memory_space<vmem>>, vector<8x9xf32>
    %3 = vector.broadcast %1 : vector<8x1xf32> to vector<8x9xf32>
    %4 = arith.mulf %3, %2 : vector<8x9xf32>
    %c24 = arith.constant 24 : index
    %c0_3 = arith.constant 0 : index
    %5 = vector.load %arg1[%c24, %c0_3] : memref<32x9xf32, #tpu.memory_space<vmem>>, vector<8x9xf32>
    %6 = arith.addf %4, %5 : vector<8x9xf32>
    %7 = vector.extract_strided_slice %0 {offsets = [0, 1], sizes = [8, 1], strides = [1, 1]} : vector<8x3xf32> to vector<8x1xf32>
    %c8 = arith.constant 8 : index
    %c0_4 = arith.constant 0 : index
    %8 = vector.load %arg1[%c8, %c0_4] : memref<32x9xf32, #tpu.memory_space<vmem>>, vector<8x9xf32>
    %9 = vector.broadcast %7 : vector<8x1xf32> to vector<8x9xf32>
    %10 = arith.mulf %9, %8 : vector<8x9xf32>
    %11 = arith.addf %6, %10 : vector<8x9xf32>
    %12 = vector.extract_strided_slice %0 {offsets = [0, 2], sizes = [8, 1], strides = [1, 1]} : vector<8x3xf32> to vector<8x1xf32>
    %c16 = arith.constant 16 : index
    %c0_5 = arith.constant 0 : index
    %13 = vector.load %arg1[%c16, %c0_5] : memref<32x9xf32, #tpu.memory_space<vmem>>, vector<8x9xf32>
    %14 = vector.broadcast %12 : vector<8x1xf32> to vector<8x9xf32>
    %15 = arith.mulf %14, %13 : vector<8x9xf32>
    %16 = arith.addf %11, %15 : vector<8x9xf32>
    %c0_6 = arith.constant 0 : index
    %c0_7 = arith.constant 0 : index
    %17 = vector.load %arg2[%c0_6, %c0_7] : memref<8x9xf32, #tpu.memory_space<vmem>>, vector<8x9xf32>
    tpu.vector_store %arg2[%c0_6, %c0_7], %16 {strides = array<i32>} : memref<8x9xf32, #tpu.memory_space<vmem>>, vector<8x9xf32>,
    return
  }
}

</mosaic_0001>

<llo_original>
// kernel: tpu_custom_call.1
$region0: #{tpu_custom_call.1}
  #allocation0 [shape = 'u32[]', space=smem, size = 0x4, offset = 0x4, fixed_abs, tag = 'smem constant byte address 0x4 - core index']
  #allocation1 [shape = 'u32[144,128]{1,0:T(1,128)}', space=vmem, size = 0x12000, scoped, tag = 'internal scratch']
  %s0 = inlined_call_operand.vmem [shape: f32[8,3], index: 0, kind: input, shape index: {}]
  %s1 = inlined_call_operand.vmem [shape: f32[32,9], index: 1, kind: input, shape index: {}]
  %s2 = inlined_call_operand.hbm [shape: f32[8,9], index: 2, kind: output, shape index: {}]
  %s3 = sld [smem:[#allocation0]]
  $region18: #{tpu_custom_call.1} parent=0
    _
  %s5 = ssub.s32 1, %s3
  %s6 = scalar_select 0, %s5, %s3
  $region1: #{tpu_custom_call.1} parent=0
    #allocation2 [shape = 'u8[4096]{0}', space=vmem, size = 0x1000, scoped, tag = 'output window, operand 0, single buffered']
    #allocation3 [shape = 's32[1]{0}', space=sflag, size = 0x4, scoped, tag = 'scoped memory for tpu_custom_call.1']
    %7 = vsyncpa [#allocation3], 0
    // Predicated region
    $region2: #{tpu_custom_call.1} parent=1 // pred_check
      _
    $region3: #{tpu_custom_call.1} parent=1 // pred_check_branch
      %9 = sbr.rel (0) target = $region5
    $region4: #{tpu_custom_call.1} parent=1 // pred_region
      _
    $region5: #{tpu_custom_call.1} parent=1 // pred_fallthru
      _
    // Predicated region
    $region6: #{tpu_custom_call.1} parent=1 // pred_check
      _
    $region7: #{tpu_custom_call.1} parent=1 // pred_check_branch
      %11 = sbr.rel (0) target = $region9
    $region8: #{tpu_custom_call.1} parent=1 // pred_region
      _
    $region9: #{tpu_custom_call.1} parent=1 // pred_fallthru
      _
    %v12 = vld [vmem:[%s0] sm:$0xff]
    %v13 = vld [vmem:[%s1] sm:$0xff]
    %15 = vset.pattern.permute.xlu0 0
    %16 = vperm.xlu0 %15, %v12
    %v17 = vpop.permute.xlu0 %16
    %v19 = vmul.f32 %v17, %v13
    %v20 = vld [vmem:[%s1 + $0x18] sm:$0xff]
    %v21 = vadd.f32 %v19, %v20
    %v22 = vld [vmem:[%s1 + $0x8] sm:$0xff]
    %23 = vset.pattern.permute.xlu0 1
    %24 = vperm.xlu0 %23, %v12
    %v25 = vpop.permute.xlu0 %24
    %v27 = vmul.f32 %v25, %v22
    %v28 = vadd.f32 %v21, %v27
    %v29 = vld [vmem:[%s1 + $0x10] sm:$0xff]
    %30 = vset.pattern.permute.xlu0 2
    %31 = vperm.xlu0 %30, %v12
    %v32 = vpop.permute.xlu0 %31
    %v34 = vmul.f32 %v32, %v29
    %v35 = vadd.f32 %v28, %v34
    %vm36 = vcmask 72704
    %37 = vst.msk [vmem:[#allocation2] sm:$0xff] %vm36, %v35
    // Predicated region
    $region10: #{tpu_custom_call.1} parent=1 // pred_check
      _
    $region11: #{tpu_custom_call.1} parent=1 // pred_check_branch
      %39 = sbr.rel (0) target = $region13
    $region12: #{tpu_custom_call.1} parent=1 // pred_region
      %s41 = ssub.s32 128, 128
      %42 = vsyncadd [#allocation3], %s41
      %s44 = sshll.u32 [#allocation2], 4
      %s45 = int_to_ptr.vmem [resolvable:$true] %s44
      %47 = dma.vmem_to_hbm [thread:$0]  %s45, 128, %s2, [#allocation3]
    $region13: #{tpu_custom_call.1} parent=1 // pred_fallthru
      _
    // Predicated region
    $region14: #{tpu_custom_call.1} parent=1 // pred_check
      _
    $region15: #{tpu_custom_call.1} parent=1 // pred_check_branch
      %49 = sbr.rel (0) target = $region17
    $region16: #{tpu_custom_call.1} parent=1 // pred_region
      %50 = dma.done [#allocation3], 128
    $region17: #{tpu_custom_call.1} parent=1 // pred_fallthru
      _
    %51 = vsyncpa [#allocation3], 1

</llo_original>
